<compile_context>
chip_gen: v7x
topology: tpu7x:2x2x1
jax: 0.10.0
libtpu: 0.0.40
codegen_flags: <defaults>
</compile_context>

<pallas_src>
import jax
import jax.numpy as jnp
from jax.experimental import pallas as pl
from jax.experimental.pallas import tpu as pltpu

_LANES = 128
_TILE_BYTES_BUDGET = 4 * 1024 * 1024     # per in/out tile (x4 live with double buffering)
_VMEM_LIMIT_BYTES = 32 * 1024 * 1024     # explicit scoped-VMEM limit (safe on v5e/v6e/v7x)


def _pick_spatial_tile(total, cap, align):
    """Largest divisor of `total` that is <= cap and a legal block dim
    (multiple of `align` or equal to the full extent). Falls back to the
    smallest legal divisor above cap (minimal VMEM overshoot)."""
    cap = max(1, min(total, cap))
    for d in range(cap, 0, -1):
        if total % d == 0 and (d % align == 0 or d == total):
            return d
    for d in range(cap + 1, total + 1):
        if total % d == 0 and (d % align == 0 or d == total):
            return d
    return total


def _pick_batch_tile(total, cap):
    d = max(1, min(total, cap))
    while total % d != 0:
        d -= 1
    return d


def _pixelnorm_kernel(x_ref, o_ref):
    # Block layout: (TB, C, ...spatial...); the channel axis is axis=1 and is
    # fully resident in the tile, so the reduction never crosses grid steps.
    x = x_ref[...].astype(jnp.float32)
    inv_c = 1.0 / x_ref.shape[1]                      # compile-time constant (no runtime divide)
    mean_sq = jnp.sum(x * x, axis=1, keepdims=True) * inv_c
    inv = jax.lax.rsqrt(mean_sq + 1e-8)               # EUP slot
    o_ref[...] = (x * inv).astype(o_ref.dtype)


def pixel_norm(x):
    """x: (N, C, H, W). Returns x * rsqrt(mean(x^2, dim=1, keepdim=True) + 1e-8)."""
    N, C, H, W = x.shape
    HW = H * W
    dtype_bytes = jnp.dtype(x.dtype).itemsize

    if HW % _LANES == 0:
        # Dense layout: spatial fills sublanes (S) and lanes (128).
        S = HW // _LANES
        bytes_per_s = C * _LANES * dtype_bytes               # one sublane-unit, one batch elem
        ts = _pick_spatial_tile(S, _TILE_BYTES_BUDGET // bytes_per_s, align=8)
        tb = 1
        if ts == S:  # whole spatial extent fits -> amortize per-step overhead over batch
            tb = _pick_batch_tile(N, _TILE_BYTES_BUDGET // max(1, bytes_per_s * S))
        x_r = x.reshape(N, C, S, _LANES)
        grid = (N // tb, S // ts)
        block = (tb, C, ts, _LANES)
        index_map = lambda i, j: (i, 0, j, 0)
    else:
        # Fallback layout for ragged HW: (N, C, HW) with HW tiled along lanes.
        bytes_per_col = C * dtype_bytes
        thw = _pick_spatial_tile(HW, _TILE_BYTES_BUDGET // bytes_per_col, align=_LANES)
        tb = 1
        if thw == HW:
            tb = _pick_batch_tile(N, _TILE_BYTES_BUDGET // max(1, bytes_per_col * HW))
        x_r = x.reshape(N, C, HW)
        grid = (N // tb, HW // thw)
        block = (tb, C, thw)
        index_map = lambda i, j: (i, 0, j)

    out = pl.pallas_call(
        _pixelnorm_kernel,
        out_shape=jax.ShapeDtypeStruct(x_r.shape, x.dtype),
        grid_spec=pltpu.PrefetchScalarGridSpec(
            num_scalar_prefetch=0,
            grid=grid,
            in_specs=[pl.BlockSpec(block, index_map)],
            out_specs=pl.BlockSpec(block, index_map),
        ),
        compiler_params=pltpu.CompilerParams(
            dimension_semantics=("parallel", "parallel"),  # both axes independent -> v7x 2-TC sharding
            vmem_limit_bytes=_VMEM_LIMIT_BYTES,
        ),
    )(x_r)

    return out.reshape(N, C, H, W)


def _reference(x):
    mean_sq = jnp.mean(x.astype(jnp.float32) ** 2, axis=1, keepdims=True)
    return (x * jax.lax.rsqrt(mean_sq + 1e-8)).astype(x.dtype)


if __name__ == "__main__":
    key = jax.random.PRNGKey(0)
    # Small NCHW input consistent with the module's conv-style usage.
    x = jax.random.normal(key, (2, 4, 16, 16), dtype=jnp.float32)

    out = jax.block_until_ready(pixel_norm(x))
    ref = _reference(x)

    assert out.shape == x.shape and out.dtype == x.dtype
    assert jnp.allclose(out, ref, atol=1e-5, rtol=1e-5)

    print("KERNEL_OK")
</pallas_src>

<mosaic_0001>
module attributes {stable_mosaic.version = 11 : i64} {
  func.func @_pixelnorm_kernel(%arg0: i32, %arg1: i32, %arg2: memref<2x4x2x128xf32, #tpu.memory_space<vmem>>, %arg3: memref<2x4x2x128xf32, #tpu.memory_space<vmem>>) attributes {dimension_semantics = [#tpu.dimension_semantics<parallel>, #tpu.dimension_semantics<parallel>], iteration_bounds = array<i64: 1, 1>, scalar_prefetch = 0 : i64, scratch_operands = 0 : i64, tpu.core_type = #tpu.core_type<tc>, window_params = [{transform_indices = @transform_0, window_bounds = array<i64: 2, 4, 2, 128>}, {transform_indices = @transform_1, window_bounds = array<i64: 2, 4, 2, 128>}]} {
    %c0 = arith.constant 0 : index
    %c0_0 = arith.constant 0 : index
    %c0_1 = arith.constant 0 : index
    %c0_2 = arith.constant 0 : index
    %0 = vector.load %arg2[%c0, %c0_0, %c0_1, %c0_2] : memref<2x4x2x128xf32, #tpu.memory_space<vmem>>, vector<2x4x2x128xf32>
    %1 = arith.mulf %0, %0 : vector<2x4x2x128xf32>
    %cst = arith.constant dense<0.000000e+00> : vector<2x2x128xf32>
    %2 = vector.multi_reduction <add>, %1, %cst [1] : vector<2x4x2x128xf32> to vector<2x2x128xf32>
    %3 = vector.shape_cast %2 : vector<2x2x128xf32> to vector<2x1x2x128xf32>
    %cst_3 = arith.constant 2.500000e-01 : f32
    %4 = vector.broadcast %cst_3 : f32 to vector<2x1x2x128xf32>
    %5 = arith.mulf %3, %4 : vector<2x1x2x128xf32>
    %cst_4 = arith.constant 9.99999993E-9 : f32
    %6 = vector.broadcast %cst_4 : f32 to vector<2x1x2x128xf32>
    %7 = arith.addf %5, %6 : vector<2x1x2x128xf32>
    %8 = math.rsqrt %7 : vector<2x1x2x128xf32>
    %9 = vector.broadcast %8 : vector<2x1x2x128xf32> to vector<2x4x2x128xf32>
    %10 = arith.mulf %0, %9 : vector<2x4x2x128xf32>
    %c0_5 = arith.constant 0 : index
    %c0_6 = arith.constant 0 : index
    %c0_7 = arith.constant 0 : index
    %c0_8 = arith.constant 0 : index
    %11 = vector.load %arg3[%c0_5, %c0_6, %c0_7, %c0_8] : memref<2x4x2x128xf32, #tpu.memory_space<vmem>>, vector<2x4x2x128xf32>
    tpu.vector_store %arg3[%c0_5, %c0_6, %c0_7, %c0_8], %10 {strides = array<i32>} : memref<2x4x2x128xf32, #tpu.memory_space<vmem>>, vector<2x4x2x128xf32>,
    return
  }
  func.func @transform_0(%arg0: i32, %arg1: i32) -> (i32, i32, i32, i32) {
    %c0_i32 = arith.constant 0 : i32
    %c0_i32_0 = arith.constant 0 : i32
    %c0_i32_1 = arith.constant 0 : i32
    return %arg0, %c0_i32, %arg1, %c0_i32_0 : i32, i32, i32, i32
  }
  func.func @transform_1(%arg0: i32, %arg1: i32) -> (i32, i32, i32, i32) {
    %c0_i32 = arith.constant 0 : i32
    %c0_i32_0 = arith.constant 0 : i32
    %c0_i32_1 = arith.constant 0 : i32
    return %arg0, %c0_i32, %arg1, %c0_i32_0 : i32, i32, i32, i32
  }
}

</mosaic_0001>

<llo_original>
// kernel: tpu_custom_call.1
$region0: #{tpu_custom_call.1}
  #allocation0 [shape = 'u32[]', space=smem, size = 0x4, offset = 0x4, fixed_abs, tag = 'smem constant byte address 0x4 - core index']
  #allocation1 [shape = 'u32[144,128]{1,0:T(1,128)}', space=vmem, size = 0x12000, scoped, tag = 'internal scratch']
  %s0 = inlined_call_operand.hbm [shape: f32[2,4,2,128], index: 0, kind: input, shape index: {}]
  %s1 = inlined_call_operand.hbm [shape: f32[2,4,2,128], index: 1, kind: output, shape index: {}]
  %s2 = sld [smem:[#allocation0]]
  $region18: #{tpu_custom_call.1} parent=0
    _
  %s4 = ssub.s32 1, %s2
  %s5 = scalar_select 0, %s4, %s2
  $region1: #{tpu_custom_call.1} parent=0
    #allocation2 [shape = 'u8[8192]{0}', space=vmem, size = 0x2000, scoped, tag = 'input window, operand 0, single buffered']
    #allocation3 [shape = 's32[1]{0}', space=sflag, size = 0x4, scoped, tag = 'scoped memory for tpu_custom_call.1']
    #allocation4 [shape = 's32[1]{0}', space=sflag, size = 0x4, scoped, tag = 'scoped memory for tpu_custom_call.1']
    #allocation5 [shape = 'u8[8192]{0}', space=vmem, size = 0x2000, scoped, tag = 'output window, operand 0, single buffered']
    %6 = vsyncpa [#allocation3], 0
    %7 = vsyncpa [#allocation4], 0
    // Predicated region
    $region2: #{tpu_custom_call.1} parent=1 // pred_check
      _
    $region3: #{tpu_custom_call.1} parent=1 // pred_check_branch
      %9 = sbr.rel (0) target = $region5
    $region4: #{tpu_custom_call.1} parent=1 // pred_region
      %s11 = ssub.s32 256, 256
      %12 = vsyncadd [#allocation3], %s11
      %s13 = sshll.u32 [#allocation2], 4
      %s14 = int_to_ptr.vmem [resolvable:$true] %s13
      %19 = dma.hbm_to_vmem [thread:$0]  %s0, 256, %s14, [#allocation3], 32, 32, 2
    $region5: #{tpu_custom_call.1} parent=1 // pred_fallthru
      _
    // Predicated region
    $region6: #{tpu_custom_call.1} parent=1 // pred_check
      _
    $region7: #{tpu_custom_call.1} parent=1 // pred_check_branch
      %21 = sbr.rel (0) target = $region9
    $region8: #{tpu_custom_call.1} parent=1 // pred_region
      %22 = dma.done [#allocation3], 256
    $region9: #{tpu_custom_call.1} parent=1 // pred_fallthru
      _
    %v23 = vld [vmem:[#allocation2] sm:$0x3]
    %v24 = vld [vmem:[#allocation2 + $0x2] sm:$0x3]
    %v25 = vld [vmem:[#allocation2 + $0x4] sm:$0x3]
    %v26 = vld [vmem:[#allocation2 + $0x6] sm:$0x3]
    %v27 = vld [vmem:[#allocation2 + $0x8] sm:$0x3]
    %v28 = vld [vmem:[#allocation2 + $0xa] sm:$0x3]
    %v29 = vld [vmem:[#allocation2 + $0xc] sm:$0x3]
    %v30 = vld [vmem:[#allocation2 + $0xe] sm:$0x3]
    %v31 = vmul.f32 %v23, %v23
    %v32 = vmul.f32 %v24, %v24
    %v33 = vmul.f32 %v25, %v25
    %v34 = vmul.f32 %v26, %v26
    %v35 = vmul.f32 %v27, %v27
    %v36 = vmul.f32 %v28, %v28
    %v37 = vmul.f32 %v29, %v29
    %v38 = vmul.f32 %v30, %v30
    %vm39 = vcmask 1041408
    %v40 = vsel %vm39, %v31, 0.0
    %v41 = vsel %vm39, %v32, 0.0
    %v42 = vadd.f32 %v40, %v41
    %v43 = vsel %vm39, %v33, 0.0
    %v44 = vadd.f32 %v42, %v43
    %v45 = vsel %vm39, %v34, 0.0
    %v46 = vadd.f32 %v44, %v45
    %v47 = vsel %vm39, %v35, 0.0
    %v48 = vsel %vm39, %v36, 0.0
    %v49 = vadd.f32 %v47, %v48
    %v50 = vsel %vm39, %v37, 0.0
    %v51 = vadd.f32 %v49, %v50
    %v52 = vsel %vm39, %v38, 0.0
    %v53 = vadd.f32 %v51, %v52
    %v54 = vmul.f32 %v46, 0.25
    %v55 = vmul.f32 %v53, 0.25
    %v56 = vadd.f32 %v54, 1e-08
    %v57 = vadd.f32 %v55, 1e-08
    %v58 = vrsqrt.pop %v56
    %v59 = vrsqrt.pop %v57
    %v60 = vmul.f32 %v23, %v58
    %v61 = vmul.f32 %v24, %v58
    %v62 = vmul.f32 %v25, %v58
    %v63 = vmul.f32 %v26, %v58
    %v64 = vmul.f32 %v27, %v59
    %v65 = vmul.f32 %v28, %v59
    %v66 = vmul.f32 %v29, %v59
    %v67 = vmul.f32 %v30, %v59
    %68 = vst [vmem:[#allocation5] sm:$0x3] %v60
    %69 = vst [vmem:[#allocation5 + $0x2] sm:$0x3] %v61
    %70 = vst [vmem:[#allocation5 + $0x4] sm:$0x3] %v62
    %71 = vst [vmem:[#allocation5 + $0x6] sm:$0x3] %v63
    %72 = vst [vmem:[#allocation5 + $0x8] sm:$0x3] %v64
    %73 = vst [vmem:[#allocation5 + $0xa] sm:$0x3] %v65
    %74 = vst [vmem:[#allocation5 + $0xc] sm:$0x3] %v66
    %75 = vst [vmem:[#allocation5 + $0xe] sm:$0x3] %v67
    // Predicated region
    $region10: #{tpu_custom_call.1} parent=1 // pred_check
      _
    $region11: #{tpu_custom_call.1} parent=1 // pred_check_branch
      %77 = sbr.rel (0) target = $region13
    $region12: #{tpu_custom_call.1} parent=1 // pred_region
      %s79 = ssub.s32 256, 256
      %80 = vsyncadd [#allocation4], %s79
      %s81 = sshll.u32 [#allocation5], 4
      %s82 = int_to_ptr.vmem [resolvable:$true] %s81
      %87 = dma.vmem_to_hbm [thread:$0]  %s82, 256, %s1, [#allocation4], 32, 32, 2
    $region13: #{tpu_custom_call.1} parent=1 // pred_fallthru
      _
    // Predicated region
    $region14: #{tpu_custom_call.1} parent=1 // pred_check
      _
    $region15: #{tpu_custom_call.1} parent=1 // pred_check_branch
      %89 = sbr.rel (0) target = $region17
    $region16: #{tpu_custom_call.1} parent=1 // pred_region
      %90 = dma.done [#allocation4], 256
    $region17: #{tpu_custom_call.1} parent=1 // pred_fallthru
      _
    %91 = vsyncpa [#allocation3], 1
    %92 = vsyncpa [#allocation4], 1

</llo_original>
